<compile_context>
chip_gen: v7x
topology: tpu7x:2x2x1
jax: 0.10.0
libtpu: 0.0.40
codegen_flags: <defaults>
</compile_context>

<pallas_src>
import jax
import jax.numpy as jnp
from jax.experimental import pallas as pl
from jax.experimental.pallas import tpu as pltpu

EPS = 1e-5  # nn.LayerNorm default


def _round_up(x, m):
    return ((x + m - 1) // m) * m


def prenorm_linear_kernel(x_ref, w_ref, bias_ref, o_ref):
    # x_ref: (TM, D) tile of flattened tokens.  LayerNorm statistics in f32 on
    # the VPU/XLU (free filler under the DMA bound); two-pass variance for
    # numerical robustness.
    x = x_ref[...].astype(jnp.float32)
    mean = jnp.mean(x, axis=-1, keepdims=True)
    centered = x - mean
    var = jnp.mean(centered * centered, axis=-1, keepdims=True)
    x_norm = centered * jax.lax.rsqrt(var + EPS)

    # Affine is pre-folded into w/bias.  Narrow only the MXU operands.
    y = x_norm.astype(w_ref.dtype)
    out = jnp.dot(y, w_ref[...], preferred_element_type=jnp.float32)
    out = out + bias_ref[...]
    o_ref[...] = out.astype(o_ref.dtype)


def prenorm_linear(x, gamma, beta, w, bias, *, tm=1024,
                   mxu_dtype=jnp.bfloat16, out_dtype=None):
    """x: (B, N, D); gamma/beta: (D,); w: (D, H); bias: (H,). Returns (B, N, H).

    x may be f32 or bf16 (kept as-is at the pallas_call boundary; LN stats are
    computed in f32 inside the kernel).  `out_dtype` controls the stored dtype
    (default: x.dtype); bf16 output halves the dominant HBM write stream.
    """
    B, N, D = x.shape
    H = w.shape[1]
    M = B * N
    out_dtype = jnp.dtype(out_dtype) if out_dtype is not None else x.dtype

    # Fold the LayerNorm affine into the linear, in f32 on the host.
    w_f32 = w.astype(jnp.float32)
    w_fold = gamma.astype(jnp.float32)[:, None] * w_f32
    b_fold = beta.astype(jnp.float32) @ w_f32 + bias.astype(jnp.float32)

    # Lane-dense output: pad H up to a multiple of 128 (unmasked vst).
    Hp = _round_up(H, 128)
    if Hp != H:
        w_fold = jnp.pad(w_fold, ((0, 0), (0, Hp - H)))
        b_fold = jnp.pad(b_fold, (0, Hp - H))
    w_fold = w_fold.astype(mxu_dtype)
    b_fold = b_fold.reshape(1, Hp).astype(jnp.float32)

    # Balanced row tiling:
    #   * clamp tm so the grid has >= 2 steps when M > 8 (v7x megacore),
    #   * split M into g near-equal tiles (pad < 8 rows per step).
    tm_cap = _round_up(pl.cdiv(M, 2), 8)
    tm_lim = max(8, min(tm, tm_cap))
    g = pl.cdiv(M, tm_lim)
    tm_eff = _round_up(pl.cdiv(M, g), 8)
    Mp = g * tm_eff

    x2 = x.reshape(M, D)          # keep caller dtype (bf16 halves the x read)
    if Mp != M:
        x2 = jnp.pad(x2, ((0, Mp - M), (0, 0)))  # zero rows -> bias, sliced off

    x_bytes = x2.dtype.itemsize
    o_bytes = out_dtype.itemsize
    w_bytes = jnp.dtype(mxu_dtype).itemsize

    cost = pl.CostEstimate(
        flops=2 * Mp * D * Hp,
        transcendentals=0,
        bytes_accessed=(Mp * D * x_bytes + D * Hp * w_bytes + Mp * Hp * o_bytes),
    )

    # Per-step VMEM footprint (double-buffered blocks + f32 temporaries),
    # with headroom, capped at 64 MiB for the v7x part.
    vmem_bytes = (2 * tm_eff * D * x_bytes          # x block (double-buffered)
                  + 2 * tm_eff * Hp * o_bytes       # out block
                  + 2 * D * Hp * w_bytes            # resident weight
                  + 2 * Hp * 4                      # resident bias
                  + tm_eff * (2 * D + Hp) * 4)      # f32 temporaries
    vmem_limit = int(min(max(2 * vmem_bytes, 32 * 1024 * 1024), 64 * 1024 * 1024))

    out = pl.pallas_call(
        prenorm_linear_kernel,
        out_shape=jax.ShapeDtypeStruct((Mp, Hp), out_dtype),
        grid_spec=pltpu.PrefetchScalarGridSpec(
            num_scalar_prefetch=0,
            grid=(g,),
            in_specs=[
                pl.BlockSpec((tm_eff, D), lambda i: (i, 0)),  # x row tile
                pl.BlockSpec((D, Hp), lambda i: (0, 0)),      # folded weight (resident)
                pl.BlockSpec((1, Hp), lambda i: (0, 0)),      # folded bias   (resident)
            ],
            out_specs=pl.BlockSpec((tm_eff, Hp), lambda i: (i, 0)),
        ),
        compiler_params=pltpu.CompilerParams(
            dimension_semantics=("parallel",),   # shards row tiles across TCs (v7x)
            vmem_limit_bytes=vmem_limit,
        ),
        cost_estimate=cost,
    )(x2, w_fold, b_fold)

    return out[:M, :H].reshape(B, N, H)


def prenorm_linear_ref(x, gamma, beta, w, bias):
    xf = x.astype(jnp.float32)
    mean = jnp.mean(xf, axis=-1, keepdims=True)
    var = jnp.mean((xf - mean) ** 2, axis=-1, keepdims=True)
    xn = (xf - mean) / jnp.sqrt(var + EPS)
    y = xn * gamma.astype(jnp.float32) + beta.astype(jnp.float32)
    return jnp.einsum("bnd,dh->bnh", y, w.astype(jnp.float32)) + bias.astype(jnp.float32)


if __name__ == "__main__":
    # TODO(synk): PreNorm.fn is arbitrary in the original module; it is
    # instantiated here as a deterministic Linear(dim -> hidden) projection.
    B, N, D, H = 2, 8, 32, 64  # batch, tokens, LayerNorm dim, fn hidden

    key = jax.random.PRNGKey(0)
    kx, kg, kb, kw, kbi = jax.random.split(key, 5)

    x = jax.random.normal(kx, (B, N, D), dtype=jnp.float32)
    gamma = jnp.ones((D,), jnp.float32) + 0.1 * jax.random.normal(kg, (D,), jnp.float32)
    beta = 0.1 * jax.random.normal(kb, (D,), jnp.float32)
    w = jax.random.normal(kw, (D, H), dtype=jnp.float32) / jnp.sqrt(D)
    bias = 0.1 * jax.random.normal(kbi, (H,), dtype=jnp.float32)

    ref = prenorm_linear_ref(x, gamma, beta, w, bias)

    # f32 MXU path: tight tolerance (verifies the fused math exactly).
    out_f32 = jax.block_until_ready(
        prenorm_linear(x, gamma, beta, w, bias, mxu_dtype=jnp.float32))
    assert out_f32.shape == (B, N, H)
    assert jnp.allclose(out_f32, ref, atol=1e-4, rtol=1e-4), "f32 path mismatch"

    # Default path: bf16 MXU operands, f32 LayerNorm stats, f32 accumulation.
    out_bf16 = jax.block_until_ready(prenorm_linear(x, gamma, beta, w, bias))
    assert out_bf16.shape == (B, N, H)
    assert jnp.allclose(out_bf16, ref, atol=3e-2, rtol=3e-2), "bf16-MXU path mismatch"

    # Low-HBM-traffic path: bf16 input at the boundary + bf16 output store.
    x_bf16 = x.astype(jnp.bfloat16)
    out_lo = jax.block_until_ready(
        prenorm_linear(x_bf16, gamma, beta, w, bias, out_dtype=jnp.bfloat16))
    assert out_lo.shape == (B, N, H) and out_lo.dtype == jnp.bfloat16
    assert jnp.allclose(out_lo.astype(jnp.float32), ref, atol=6e-2, rtol=6e-2), \
        "bf16-in/bf16-out path mismatch"

    # Ragged row count (M % 8 != 0) exercises the balanced-tile padding path.
    B2, N2 = 3, 7
    x2 = jax.random.normal(kx, (B2, N2, D), dtype=jnp.float32)
    out2 = jax.block_until_ready(prenorm_linear(x2, gamma, beta, w, bias))
    ref2 = prenorm_linear_ref(x2, gamma, beta, w, bias)
    assert out2.shape == (B2, N2, H)
    assert jnp.allclose(out2, ref2, atol=3e-2, rtol=3e-2), "ragged-M mismatch"

    # Medium MobileViT-like shape: multi-step grid + Hp padding (192 -> 256).
    B3, N3, H3 = 2, 640, 192
    kx3, kw3, kb3 = jax.random.split(kx, 3)
    x3 = jax.random.normal(kx3, (B3, N3, D), dtype=jnp.float32)
    w3 = jax.random.normal(kw3, (D, H3), dtype=jnp.float32) / jnp.sqrt(D)
    bias3 = 0.1 * jax.random.normal(kb3, (H3,), dtype=jnp.float32)
    out3 = jax.block_until_ready(prenorm_linear(x3, gamma, beta, w3, bias3))
    ref3 = prenorm_linear_ref(x3, gamma, beta, w3, bias3)
    assert out3.shape == (B3, N3, H3)
    assert jnp.allclose(out3, ref3, atol=3e-2, rtol=3e-2), "multi-tile mismatch"

    print("KERNEL_OK")
</pallas_src>

<mosaic_0001>
module attributes {stable_mosaic.version = 11 : i64} {
  func.func @prenorm_linear_kernel(%arg0: i32, %arg1: memref<8x32xf32, #tpu.memory_space<vmem>>, %arg2: memref<32x128xf32, #tpu.memory_space<vmem>>, %arg3: memref<1x128xf32, #tpu.memory_space<vmem>>, %arg4: memref<8x128xf32, #tpu.memory_space<vmem>>) attributes {dimension_semantics = [#tpu.dimension_semantics<parallel>], iteration_bounds = array<i64: 2>, scalar_prefetch = 0 : i64, scratch_operands = 0 : i64, tpu.core_type = #tpu.core_type<tc>, window_params = [{transform_indices = @transform_0, window_bounds = array<i64: 8, 32>}, {pipeline_mode = #tpu.pipeline_mode<synchronous>, transform_indices = @transform_1, window_bounds = array<i64: 32, 128>}, {pipeline_mode = #tpu.pipeline_mode<synchronous>, transform_indices = @transform_2, window_bounds = array<i64: 1, 128>}, {transform_indices = @transform_3, window_bounds = array<i64: 8, 128>}]} {
    %c0 = arith.constant 0 : index
    %c0_0 = arith.constant 0 : index
    %0 = vector.load %arg1[%c0, %c0_0] : memref<8x32xf32, #tpu.memory_space<vmem>>, vector<8x32xf32>
    %cst = arith.constant dense<0.000000e+00> : vector<8xf32>
    %1 = vector.multi_reduction <add>, %0, %cst [1] : vector<8x32xf32> to vector<8xf32>
    %2 = vector.shape_cast %1 : vector<8xf32> to vector<8x1xf32>
    %cst_1 = arith.constant 3.200000e+01 : f32
    %3 = vector.broadcast %cst_1 : f32 to vector<8x1xf32>
    %4 = arith.divf %2, %3 : vector<8x1xf32>
    %5 = vector.broadcast %4 : vector<8x1xf32> to vector<8x32xf32>
    %6 = arith.subf %0, %5 : vector<8x32xf32>
    %7 = arith.mulf %6, %6 : vector<8x32xf32>
    %cst_2 = arith.constant dense<0.000000e+00> : vector<8xf32>
    %8 = vector.multi_reduction <add>, %7, %cst_2 [1] : vector<8x32xf32> to vector<8xf32>
    %9 = vector.shape_cast %8 : vector<8xf32> to vector<8x1xf32>
    %cst_3 = arith.constant 3.200000e+01 : f32
    %10 = vector.broadcast %cst_3 : f32 to vector<8x1xf32>
    %11 = arith.divf %9, %10 : vector<8x1xf32>
    %cst_4 = arith.constant 9.99999974E-6 : f32
    %12 = vector.broadcast %cst_4 : f32 to vector<8x1xf32>
    %13 = arith.addf %11, %12 : vector<8x1xf32>
    %14 = math.rsqrt %13 : vector<8x1xf32>
    %15 = vector.broadcast %14 : vector<8x1xf32> to vector<8x32xf32>
    %16 = arith.mulf %6, %15 : vector<8x32xf32>
    %c0_5 = arith.constant 0 : index
    %c0_6 = arith.constant 0 : index
    %17 = vector.load %arg2[%c0_5, %c0_6] : memref<32x128xf32, #tpu.memory_space<vmem>>, vector<32x128xf32>
    %cst_7 = arith.constant dense<0.000000e+00> : vector<8x128xf32>
    %18 = tpu.matmul %16, %17, %cst_7 {dimension_numbers = #tpu.dot_dimension_numbers<[1], [0], [0], [1], [0, 0, 1, 1], [], []>} : vector<8x32xf32>, vector<32x128xf32>, vector<8x128xf32> -> vector<8x128xf32>
    %c0_8 = arith.constant 0 : index
    %c0_9 = arith.constant 0 : index
    %19 = vector.load %arg3[%c0_8, %c0_9] : memref<1x128xf32, #tpu.memory_space<vmem>>, vector<1x128xf32>
    %20 = vector.broadcast %19 : vector<1x128xf32> to vector<8x128xf32>
    %21 = arith.addf %18, %20 : vector<8x128xf32>
    %c0_10 = arith.constant 0 : index
    %c0_11 = arith.constant 0 : index
    %22 = vector.load %arg4[%c0_10, %c0_11] : memref<8x128xf32, #tpu.memory_space<vmem>>, vector<8x128xf32>
    tpu.vector_store %arg4[%c0_10, %c0_11], %21 {strides = array<i32>} : memref<8x128xf32, #tpu.memory_space<vmem>>, vector<8x128xf32>,
    return
  }
  func.func @transform_0(%arg0: i32) -> (i32, i32) {
    %c0_i32 = arith.constant 0 : i32
    %c0_i32_0 = arith.constant 0 : i32
    return %arg0, %c0_i32 : i32, i32
  }
  func.func @transform_1(%arg0: i32) -> (i32, i32) {
    %c0_i32 = arith.constant 0 : i32
    %c0_i32_0 = arith.constant 0 : i32
    %c0_i32_1 = arith.constant 0 : i32
    return %c0_i32, %c0_i32_0 : i32, i32
  }
  func.func @transform_2(%arg0: i32) -> (i32, i32) {
    %c0_i32 = arith.constant 0 : i32
    %c0_i32_0 = arith.constant 0 : i32
    %c0_i32_1 = arith.constant 0 : i32
    return %c0_i32, %c0_i32_0 : i32, i32
  }
  func.func @transform_3(%arg0: i32) -> (i32, i32) {
    %c0_i32 = arith.constant 0 : i32
    %c0_i32_0 = arith.constant 0 : i32
    return %arg0, %c0_i32 : i32, i32
  }
}

</mosaic_0001>

<llo_original>
// kernel: tpu_custom_call.1
$region0: #{tpu_custom_call.1}
  #allocation0 [shape = 'u32[]', space=smem, size = 0x4, offset = 0x4, fixed_abs, tag = 'smem constant byte address 0x4 - core index']
  #allocation1 [shape = 'u32[144,128]{1,0:T(1,128)}', space=vmem, size = 0x12000, scoped, tag = 'internal scratch']
  %s0 = inlined_call_operand.hbm [shape: f32[16,32], index: 0, kind: input, shape index: {}]
  %s1 = inlined_call_operand.hbm [shape: f32[32,128], index: 1, kind: input, shape index: {}]
  %s2 = inlined_call_operand.vmem [shape: f32[1,128], index: 2, kind: input, shape index: {}]
  %s3 = inlined_call_operand.hbm [shape: f32[16,128], index: 3, kind: output, shape index: {}]
  %s4 = sld [smem:[#allocation0]]
  $region53: #{tpu_custom_call.1} parent=0
    _
  %s6 = ssub.s32 1, %s4
  %s7 = scalar_select 0, %s6, %s4
  $region1: #{tpu_custom_call.1} parent=0
    #allocation2 [shape = 'u8[8192]{0}', space=vmem, size = 0x2000, scoped, tag = 'input window, operand 0']
    #allocation3 [shape = 's32[2]{0}', space=sflag, size = 0x8, scoped, tag = 'scoped memory for tpu_custom_call.1']
    #allocation4 [shape = 's32[2]{0}', space=sflag, size = 0x8, scoped, tag = 'scoped memory for tpu_custom_call.1']
    #allocation5 [shape = 'u8[16384]{0}', space=vmem, size = 0x4000, scoped, tag = 'input window, operand 1, single buffered']
    #allocation6 [shape = 's32[1]{0}', space=sflag, size = 0x4, scoped, tag = 'scoped memory for tpu_custom_call.1']
    #allocation7 [shape = 'u8[8192]{0}', space=vmem, size = 0x2000, scoped, tag = 'output window, operand 0']
    %8 = vsyncpa [#allocation3], 0
    %s9 = scalar_lea.sflag [#allocation3], 1
    %10 = vsyncpa %s9, 0
    %11 = vsyncpa [#allocation6], 0
    %12 = vsyncpa [#allocation4], 0
    %s13 = scalar_lea.sflag [#allocation4], 1
    %14 = vsyncpa %s13, 0
    loop: start=0, step=1, limit=4
    $region2: #{tpu_custom_call.1} parent=1 // loop_pre_header
      _
    $region3: #{tpu_custom_call.1} parent=1 // loop_header
      %s16 = sphi 0, %s20
      %p17 = scmp.ge.s32.totalorder %s16, 4
      %s26 = sphi 0, %s28
      %s29 = sphi 0, %s26
      %s30 = sphi 0, %s29
      %s46 = sphi 0, %s30
      %s50 = sphi 0, %s50
      %s52 = sphi 0, %s50
      %s53 = sphi 0, %s52
      %s67 = sphi 0, %s53
      %s71 = sphi 0, %s71
      %s73 = sphi 0, %s71
      %s74 = sphi 0, %s73
      %s88 = sphi 0, %s74
      %s94 = sphi 0, %s96
      %s97 = sphi 0, %s94
      %s98 = sphi 0, %s97
      %s114 = sphi 0, %s98
    $region4: #{tpu_custom_call.1} parent=1 // loop_header_branch
      %19 = sbr.rel (%p17) target = $region8
    $region5: #{tpu_custom_call.1} parent=1 // loop_body
      %s21 = ssub.s32 %s16, 1
      %s22 = ssub.s32 %s16, 2
      %s23 = sadd.s32 %s16, 1
      %s24 = ssub.s32 %s16, %s23
      %p25 = scmp.eq.s32.totalorder %s24, 0
      %s27 = sadd.s32 %s26, 1
      %s28 = scalar_select %p25, %s26, %s27
      %p31 = pneg %p25
      %p32 = scmp.eq.s32.totalorder %s16, 1
      %p33 = por %p31, %p32
      %p34 = scmp.ne.s32.totalorder %s26, %s29
      %p35 = scmp.eq.s32.totalorder %s16, 0
      %p36 = por %p34, %p35
      %p37 = scmp.ne.s32.totalorder %s26, %s29
      %p38 = scmp.eq.s32.totalorder %s21, 1
      %p39 = por %p37, %p38
      %p40 = scmp.ne.s32.totalorder %s29, %s30
      %p41 = scmp.eq.s32.totalorder %s21, 0
      %p42 = por %p40, %p41
      %p43 = scmp.ne.s32.totalorder %s29, %s30
      %p44 = scmp.eq.s32.totalorder %s22, 1
      %p45 = por %p43, %p44
      %p47 = scmp.ne.s32.totalorder %s30, %s46
      %p48 = scmp.eq.s32.totalorder %s22, 0
      %p49 = por %p47, %p48
      %s51 = sadd.s32 %s50, 1
      %p54 = scmp.eq.s32.totalorder %s16, 1
      %p55 = scmp.ne.s32.totalorder %s50, %s52
      %p56 = scmp.eq.s32.totalorder %s16, 0
      %p57 = por %p55, %p56
      %p58 = scmp.ne.s32.totalorder %s50, %s52
      %p59 = scmp.eq.s32.totalorder %s21, 1
      %p60 = por %p58, %p59
      %p61 = scmp.ne.s32.totalorder %s52, %s53
      %p62 = scmp.eq.s32.totalorder %s21, 0
      %p63 = por %p61, %p62
      %p64 = scmp.ne.s32.totalorder %s52, %s53
      %p65 = scmp.eq.s32.totalorder %s22, 1
      %p66 = por %p64, %p65
      %p68 = scmp.ne.s32.totalorder %s53, %s67
      %p69 = scmp.eq.s32.totalorder %s22, 0
      %p70 = por %p68, %p69
      %s72 = sadd.s32 %s71, 1
      %p75 = scmp.eq.s32.totalorder %s16, 1
      %p76 = scmp.ne.s32.totalorder %s71, %s73
      %p77 = scmp.eq.s32.totalorder %s16, 0
      %p78 = por %p76, %p77
      %p79 = scmp.ne.s32.totalorder %s71, %s73
      %p80 = scmp.eq.s32.totalorder %s21, 1
      %p81 = por %p79, %p80
      %p82 = scmp.ne.s32.totalorder %s73, %s74
      %p83 = scmp.eq.s32.totalorder %s21, 0
      %p84 = por %p82, %p83
      %p85 = scmp.ne.s32.totalorder %s73, %s74
      %p86 = scmp.eq.s32.totalorder %s22, 1
      %p87 = por %p85, %p86
      %p89 = scmp.ne.s32.totalorder %s74, %s88
      %p90 = scmp.eq.s32.totalorder %s22, 0
      %p91 = por %p89, %p90
      %s92 = ssub.s32 %s16, %s23
      %p93 = scmp.eq.s32.totalorder %s92, 0
      %s95 = sadd.s32 %s94, 1
      %s96 = scalar_select %p93, %s94, %s95
      %p99 = pneg %p93
      %p100 = scmp.eq.s32.totalorder %s16, 1
      %p101 = por %p99, %p100
      %p102 = scmp.ne.s32.totalorder %s94, %s97
      %p103 = scmp.eq.s32.totalorder %s16, 0
      %p104 = por %p102, %p103
      %p105 = scmp.ne.s32.totalorder %s94, %s97
      %p106 = scmp.eq.s32.totalorder %s21, 1
      %p107 = por %p105, %p106
      %p108 = scmp.ne.s32.totalorder %s97, %s98
      %p109 = scmp.eq.s32.totalorder %s21, 0
      %p110 = por %p108, %p109
      %p111 = scmp.ne.s32.totalorder %s97, %s98
      %p112 = scmp.eq.s32.totalorder %s22, 1
      %p113 = por %p111, %p112
      %p115 = scmp.ne.s32.totalorder %s98, %s114
      %p116 = scmp.eq.s32.totalorder %s22, 0
      %p117 = por %p115, %p116
      %p118 = scmp.le.s32.totalorder 1, %s16
      %p119 = scmp.lt.s32.totalorder %s16, 3
      %p120 = pnand %p118, %p119
      %p121 = pneg %p120
      // Predicated region
      $region9: #{tpu_custom_call.1} parent=5 // pred_check
        _
      $region10: #{tpu_custom_call.1} parent=5 // pred_check_branch
        %123 = sbr.rel (%p120) target = $region12
      $region11: #{tpu_custom_call.1} parent=5 // pred_region
        %s124 = ssub.s32 %s16, 1
        // Predicated region
        $region13: #{tpu_custom_call.1} parent=11 // pred_check
          %p125 = pneg %p63
        $region14: #{tpu_custom_call.1} parent=11 // pred_check_branch
          %127 = sbr.rel (%p125) target = $region16
        $region15: #{tpu_custom_call.1} parent=11 // pred_region
          %s129 = ssub.s32 512, 512
          %130 = vsyncadd [#allocation6], %s129
          %s131 = sshll.u32 [#allocation5], 4
          %s132 = int_to_ptr.vmem [resolvable:$true] %s131
          %137 = dma.hbm_to_vmem [thread:$0]  %s1, 512, %s132, [#allocation6], 128, 128, 8
        $region16: #{tpu_custom_call.1} parent=11 // pred_fallthru
          _
        // Predicated region
        $region17: #{tpu_custom_call.1} parent=11 // pred_check
          %p138 = pneg %p84
        $region18: #{tpu_custom_call.1} parent=11 // pred_check_branch
          %140 = sbr.rel (%p138) target = $region20
        $region19: #{tpu_custom_call.1} parent=11 // pred_region
          _
        $region20: #{tpu_custom_call.1} parent=11 // pred_fallthru
          _
      $region12: #{tpu_custom_call.1} parent=5 // pred_fallthru
        _
      %p141 = scmp.lt.s32.totalorder %s16, 2
      // Predicated region
      $region21: #{tpu_custom_call.1} parent=5 // pred_check
        %p142 = pneg %p141
      $region22: #{tpu_custom_call.1} parent=5 // pred_check_branch
        %144 = sbr.rel (%p142) target = $region24
      $region23: #{tpu_custom_call.1} parent=5 // pred_region
        // Predicated region
        $region25: #{tpu_custom_call.1} parent=23 // pred_check
          %p145 = pneg %p36
        $region26: #{tpu_custom_call.1} parent=23 // pred_check_branch
          %147 = sbr.rel (%p145) target = $region28
        $region27: #{tpu_custom_call.1} parent=23 // pred_region
          %s148 = sand.u32 %s26, 1
          %s149 = scalar_lea.sflag [#allocation3], %s148
          %s150 = sand.u32 %s26, 1
          %s151 = smul.addr %s150, 8
          %s152 = scalar_lea.vmem [#allocation2], %s151
          %s154 = ssub.s32 128, 128
          %155 = vsyncadd %s149, %s154
          %s156 = smul.addr %s16, 128
          %s157 = scalar_lea.hbm %s0, %s156
          %s159 = sshll.u32 %s152, 4
          %s160 = int_to_ptr.vmem [resolvable:$true] %s159
          %162 = dma.hbm_to_vmem [thread:$0]  %s157, 128, %s160, %s149
        $region28: #{tpu_custom_call.1} parent=23 // pred_fallthru
          _
      $region24: #{tpu_custom_call.1} parent=5 // pred_fallthru
        _
      %p163 = scmp.le.s32.totalorder 1, %s16
      %p164 = scmp.lt.s32.totalorder %s16, 3
      %p165 = pnand %p163, %p164
      %p166 = pneg %p165
      // Predicated region
      $region29: #{tpu_custom_call.1} parent=5 // pred_check
        _
      $region30: #{tpu_custom_call.1} parent=5 // pred_check_branch
        %168 = sbr.rel (%p165) target = $region32
      $region31: #{tpu_custom_call.1} parent=5 // pred_region
        %s169 = ssub.s32 %s16, 1
        %s170 = sand.u32 %s29, 1
        %s171 = scalar_lea.sflag [#allocation3], %s170
        %s172 = sand.u32 %s29, 1
        %s173 = smul.addr %s172, 8
        %s174 = scalar_lea.vmem [#allocation2], %s173
        // Predicated region
        $region33: #{tpu_custom_call.1} parent=31 // pred_check
          %p175 = pneg %p42
        $region34: #{tpu_custom_call.1} parent=31 // pred_check_branch
          %177 = sbr.rel (%p175) target = $region36
        $region35: #{tpu_custom_call.1} parent=31 // pred_region
          %178 = dma.done %s171, 128
        $region36: #{tpu_custom_call.1} parent=31 // pred_fallthru
          _
        // Predicated region
        $region37: #{tpu_custom_call.1} parent=31 // pred_check
          %p179 = pneg %p63
        $region38: #{tpu_custom_call.1} parent=31 // pred_check_branch
          %181 = sbr.rel (%p179) target = $region40
        $region39: #{tpu_custom_call.1} parent=31 // pred_region
          %182 = dma.done [#allocation6], 512
        $region40: #{tpu_custom_call.1} parent=31 // pred_fallthru
          _
        %s183 = sand.u32 %s29, 1
        %s184 = scalar_lea.sflag [#allocation3], %s183
        %s185 = sand.u32 %s29, 1
        %s186 = smul.addr %s185, 8
        %s187 = scalar_lea.vmem [#allocation2], %s186
        %p188 = pneg %p42
        %p189 = pneg %p39
        %p190 = pneg %p63
        %p191 = pneg %p60
        %p192 = pneg %p84
        %p193 = pneg %p81
        %p194 = pneg %p110
        %p195 = pneg %p107
        %s196 = sand.u32 %s97, 1
        %s197 = scalar_lea.sflag [#allocation4], %s196
        %s198 = sand.u32 %s97, 1
        %s199 = smul.addr %s198, 8
        %s200 = scalar_lea.vmem [#allocation7], %s199
        %v201 = vld [vmem:[%s174] sm:$0xff]
        %vm202 = vcmask 261120
        %v203 = vsel %vm202, %v201, 0.0
        %204 = vadd.xlane.f32.xlu0 %v203
        %v205 = vpop.xlane.xlu0 %204
        %v206 = vrcp.pop 32.0
        %v207 = vmul.f32 %v205, %v206
        %v208 = vsub.f32 %v201, %v207
        %v209 = vmul.f32 %v208, %v208
        %v210 = vsel %vm202, %v209, 0.0
        %211 = vadd.xlane.f32.xlu0 %v210
        %v212 = vpop.xlane.xlu0 %211
        %v213 = vmul.f32 %v212, %v206
        %v214 = vadd.f32 %v213, 1e-05
        %v215 = vrsqrt.pop %v214
        %v216 = vmul.f32 %v208, %v215
        %v217 = vld [vmem:[#allocation5] sm:$0xff]
        %v218 = vld [vmem:[#allocation5 + $0x8] sm:$0xff]
        %v219 = vld [vmem:[#allocation5 + $0x10] sm:$0xff]
        %v220 = vld [vmem:[#allocation5 + $0x18] sm:$0xff]
        %v221 = vld [vmem:[%s2] sm:$0x1]
        %v223 = vlaneseq
        %v224 = vshrl.u32 %v223, 7
        %v225 = vsub.s32 0, %v224
        %v226 = vrot.slane %v221, %v225
        %v229 = vsel %vm202, %v216, 0
        %231 = vmatprep.subr.mxu0 0.0
        %232 = vmatpush1.msra.mxu0 %v217
        %233 = vmatprep.subr.mxu0 0.0
        %234 = vmatpush1.msra.mxu0 %v218
        %235 = vmatprep.subr.mxu0 0.0
        %236 = vmatpush1.msra.mxu0 %v219
        %237 = vmatprep.subr.mxu0 0.0
        %238 = vmatpush1.msra.mxu0 %v220
        %239 = vmatprep.subr.mxu0 0.0
        %240 = vmatpush1.msra.mxu0 0.0
        %241 = vmatprep.subr.mxu0 0.0
        %242 = vmatpush1.msra.mxu0 0.0
        %243 = vmatprep.subr.mxu0 0.0
        %244 = vmatpush1.msra.mxu0 0.0
        %245 = vmatprep.subr.mxu0 0.0
        %246 = vmatpush1.msra.mxu0 0.0
        %247 = vmatprep.subr.mxu0 0.0
        %248 = vmatpush1.msra.mxu0 0.0
        %249 = vmatprep.subr.mxu0 0.0
        %250 = vmatpush1.msra.mxu0 0.0
        %251 = vmatprep.subr.mxu0 0.0
        %252 = vmatpush1.msra.mxu0 0.0
        %253 = vmatprep.subr.mxu0 0.0
        %254 = vmatpush1.msra.mxu0 0.0
        %255 = vmatprep.subr.mxu0 0.0
        %256 = vmatpush1.msra.mxu0 0.0
        %257 = vmatprep.subr.mxu0 0.0
        %258 = vmatpush1.msra.mxu0 0.0
        %259 = vmatprep.subr.mxu0 0.0
        %260 = vmatpush1.msra.mxu0 0.0
        %261 = vmatprep.subr.mxu0 0.0
        %262 = vmatpush1.msra.mxu0 0.0
        %263 = vmatprep.subr.mxu0 0.0
        %264 = vmatpush1.msra.mxu0 0.0
        %265 = vmatprep.subr.mxu0 0.0
        %266 = vmatpush1.msra.mxu0 0.0
        %267 = vmatprep.subr.mxu0 0.0
        %268 = vmatpush1.msra.mxu0 0.0
        %269 = vmatprep.subr.mxu0 0.0
        %270 = vmatpush1.msra.mxu0 0.0
        %271 = vmatprep.subr.mxu0 0.0
        %272 = vmatpush1.msra.mxu0 0.0
        %273 = vmatprep.subr.mxu0 0.0
        %274 = vmatpush1.msra.mxu0 0.0
        %275 = vmatprep.subr.mxu0 0.0
        %276 = vmatpush1.msra.mxu0 0.0
        %277 = vmatprep.subr.mxu0 0.0
        %278 = vmatpush1.msra.mxu0 0.0
        %279 = vmatprep.subr.mxu0 0.0
        %280 = vmatpush1.msra.mxu0 0.0
        %281 = vmatprep.subr.mxu0 0.0
        %282 = vmatpush1.msra.mxu0 0.0
        %283 = vmatprep.subr.mxu0 0.0
        %284 = vmatpush1.msra.mxu0 0.0
        %285 = vmatprep.subr.mxu0 0.0
        %286 = vmatpush1.msra.mxu0 0.0
        %287 = vmatprep.subr.mxu0 0.0
        %288 = vmatpush1.msra.mxu0 0.0
        %289 = vmatprep.subr.mxu0 0.0
        %290 = vmatpush1.msra.mxu0 0.0
        %291 = vmatprep.subr.mxu0 0.0
        %292 = vmatpush1.msra.mxu0 0.0
        %293 = vmatprep.subr.mxu0 0.0
        %294 = vmatpush1.msra.mxu0 0.0
        %295 = vmatprep.mubr.f32.mxu0 0.0
        %296 = vmatmul.mubr.f32.gmra.mrb[0].mxu0 %v229
        %v297 = vpop.f32.mrb[0].mxu0
        %v298 = vadd.f32 %v226, %v297
        %v299 = vpop.f32.mrb[0].mxu0
        %300 = vdwg.mxu0
        %301 = vst [vmem:[%s200] sm:$0xff] %v298
        %s302 = sand.u32 %s97, 1
        %s303 = scalar_lea.sflag [#allocation4], %s302
        %s304 = sand.u32 %s97, 1
        %s305 = smul.addr %s304, 8
        %s306 = scalar_lea.vmem [#allocation7], %s305
        // Predicated region
        $region41: #{tpu_custom_call.1} parent=31 // pred_check
          %p307 = pneg %p107
        $region42: #{tpu_custom_call.1} parent=31 // pred_check_branch
          %309 = sbr.rel (%p307) target = $region44
        $region43: #{tpu_custom_call.1} parent=31 // pred_region
          %s311 = ssub.s32 128, 128
          %312 = vsyncadd %s303, %s311
          %s313 = smul.addr %s21, 128
          %s314 = scalar_lea.hbm %s3, %s313
          %s316 = sshll.u32 %s306, 4
          %s317 = int_to_ptr.vmem [resolvable:$true] %s316
          %319 = dma.vmem_to_hbm [thread:$0]  %s317, 128, %s314, %s303
        $region44: #{tpu_custom_call.1} parent=31 // pred_fallthru
          _
      $region32: #{tpu_custom_call.1} parent=5 // pred_fallthru
        _
      %p320 = scmp.le.s32.totalorder 2, %s16
      // Predicated region
      $region45: #{tpu_custom_call.1} parent=5 // pred_check
        %p321 = pneg %p320
      $region46: #{tpu_custom_call.1} parent=5 // pred_check_branch
        %323 = sbr.rel (%p321) target = $region48
      $region47: #{tpu_custom_call.1} parent=5 // pred_region
        %s324 = ssub.s32 %s16, 2
        // Predicated region
        $region49: #{tpu_custom_call.1} parent=47 // pred_check
          %p325 = pneg %p113
        $region50: #{tpu_custom_call.1} parent=47 // pred_check_branch
          %327 = sbr.rel (%p325) target = $region52
        $region51: #{tpu_custom_call.1} parent=47 // pred_region
          %s328 = sand.u32 %s98, 1
          %s329 = scalar_lea.sflag [#allocation4], %s328
          %s330 = sand.u32 %s98, 1
          %s331 = smul.addr %s330, 8
          %s332 = scalar_lea.vmem [#allocation7], %s331
          %333 = dma.done %s329, 128
        $region52: #{tpu_custom_call.1} parent=47 // pred_fallthru
          _
      $region48: #{tpu_custom_call.1} parent=5 // pred_fallthru
        _
    $region6: #{tpu_custom_call.1} parent=1 // loop_footer
      %s20 = sadd.s32 1, %s16
    $region7: #{tpu_custom_call.1} parent=1 // loop_footer_branch
      %15 = sbr.rel target = $region3
    $region8: #{tpu_custom_call.1} parent=1 // loop_exit
      _
    %334 = vsyncpa [#allocation3], 1
    %s335 = scalar_lea.sflag [#allocation3], 1
    %336 = vsyncpa %s335, 1
    %337 = vsyncpa [#allocation6], 1
    %338 = vsyncpa [#allocation4], 1
    %s339 = scalar_lea.sflag [#allocation4], 1
    %340 = vsyncpa %s339, 1

</llo_original>
